<compile_context>
chip_gen: v5e
topology: v5e:2x2
jax: 0.10.0
libtpu: 0.0.40
codegen_flags: <defaults>
</compile_context>

<pallas_src>
import numpy as np
import jax
import jax.numpy as jnp
from jax import lax
from jax.experimental import pallas as pl
from jax.experimental.pallas import tpu as pltpu  # noqa: F401


# --------------------------------------------------------------------------
# Fused forward kernel
# --------------------------------------------------------------------------
def _make_fused_kernel(*, n_steps, n_seq, batch, n_targets, num_layers):
    """Build the whole-forward kernel (everything resident in VMEM).

    ref layout:
      refs[0]                    x0       (T*N, In)  time-major layer-0 input,
                                                     row = t*N + i*B + b
      refs[1 + 3*l + 0]          w_ih_l   (In_l, H)
      refs[1 + 3*l + 1]          w_hh_l   (H, H)
      refs[1 + 3*l + 2]          bias_l   (1, H)     (= b_ih + b_hh)
      refs[1 + 3*L + 0 .. 3]     packed head: w1 (nt*H, Hh), b1 (1, Hh),
                                              w2 (Hh, 128),  b2 (1, 128)
      refs[-1]                   out slab (T*B, 128), row = t*B + b
    """
    T, N, B, nt = n_steps, n_seq, batch, n_targets

    def kernel(*refs):
        x_ref = refs[0]
        layer_refs = refs[1:1 + 3 * num_layers]
        w1h_ref, b1h_ref, w2h_ref, b2h_ref, o_ref = refs[1 + 3 * num_layers:]

        # ---- stacked tanh-RNN, layer by layer ------------------------------
        cur = x_ref[...]                                   # (T*N, In)
        hs = []
        for l in range(num_layers):
            w_ih = layer_refs[3 * l][...]
            w_hh = layer_refs[3 * l + 1][...]
            bias = layer_refs[3 * l + 2][...]              # (1, H)
            hdim = w_hh.shape[0]

            # hoisted input projection: one batched MXU matmul for the layer
            u = jnp.dot(cur, w_ih, preferred_element_type=jnp.float32) + bias

            h = jnp.zeros((N, hdim), jnp.float32)          # carry stays in vregs
            hs = []
            for t in range(T):                             # fully unrolled
                h = jnp.tanh(
                    u[t * N:(t + 1) * N, :]
                    + jnp.dot(h, w_hh, preferred_element_type=jnp.float32))
                hs.append(h)
            if l + 1 < num_layers:
                cur = jnp.concatenate(hs, axis=0)          # (T*N, H) -> next layer

        # ---- re-pack last-layer hidden states into agents rows -------------
        # agents[t*B + b, i*H:(i+1)*H] = h_last[t, i*B + b]  (== input_agents)
        agents = jnp.concatenate(
            [jnp.concatenate([hs[t][i * B:(i + 1) * B, :] for i in range(nt)],
                             axis=1)
             for t in range(T)],
            axis=0)                                        # (T*B, nt*H)

        # ---- fused verify + pulse + critic head (block-diag packed) --------
        hid = jnp.maximum(
            jnp.dot(agents, w1h_ref[...], preferred_element_type=jnp.float32)
            + b1h_ref[...], 0.0)                           # (T*B, 256)
        o_ref[...] = (
            jnp.dot(hid, w2h_ref[...], preferred_element_type=jnp.float32)
            + b2h_ref[...]).astype(o_ref.dtype)            # lane-dense (T*B, 128)

    return kernel


# --------------------------------------------------------------------------
# Parameter construction (deterministic, synthetic) + packing for the kernel
# --------------------------------------------------------------------------
def make_params(key, *, n_targets, targets_raw, input_common, input_per_level,
                hidden, num_layers, pulse_hidden, verify_hidden, critic_hidden,
                output_common, output_per_level):
    tr = np.asarray(targets_raw, dtype=np.float64)
    targets = (tr - (tr[-1] + tr[0]) / 2.0) / (tr[-1] - tr[0])

    in_size = input_common + input_per_level + 1

    def u(k, shape, scale=0.1):
        return jax.random.uniform(k, shape, jnp.float32, -scale, scale)

    keys = iter(jax.random.split(key, 64))
    rnn = []
    for layer in range(num_layers):
        lin = in_size if layer == 0 else hidden
        rnn.append((u(next(keys), (lin, hidden)),
                    u(next(keys), (hidden, hidden)),
                    u(next(keys), (hidden,)),
                    u(next(keys), (hidden,))))

    verify = (u(next(keys), (hidden, verify_hidden)),
              u(next(keys), (verify_hidden,)),
              u(next(keys), (verify_hidden, output_per_level)),
              u(next(keys), (output_per_level,)))

    pulse = (u(next(keys), (hidden * n_targets, pulse_hidden)),
             u(next(keys), (pulse_hidden,)),
             u(next(keys), (pulse_hidden, output_common + 1)),
             u(next(keys), (output_common + 1,)))

    critic = (u(next(keys), (hidden * n_targets, critic_hidden)),
              u(next(keys), (critic_hidden,)),
              u(next(keys), (critic_hidden, 1)),
              u(next(keys), (1,)))

    return dict(targets=jnp.asarray(targets, jnp.float32),
                hidden_size=hidden, rnn=rnn, verify=verify,
                pulse=pulse, critic=critic)


def pack_for_kernel(params):
    """Pack per-head weights into one block-diagonal linear->ReLU->linear pair
    whose output columns already follow the module's output channel order:
      cols 0:oc            pulse common policy
      cols oc + 2i : +2    verify policy for agent i (i = 0..nt-1)
      col  oc + 2*nt       skip policy
      col  oc + 2*nt + 1   critic value
      remaining cols       zero padding (lane-dense 128-wide store)
    """
    nt = int(params["targets"].shape[0])
    H = int(params["hidden_size"])

    layer_weights = []
    for (w_ih, w_hh, b_ih, b_hh) in params["rnn"]:
        layer_weights.extend([w_ih, w_hh, (b_ih + b_hh).reshape(1, -1)])

    vw1, vb1, vw2, vb2 = params["verify"]       # (H,vh),(vh,),(vh,ov),(ov,)
    pw1, pb1, pw2, pb2 = params["pulse"]        # (nt*H,ph),(ph,),(ph,oc+1),(oc+1,)
    cw1, cb1, cw2, cb2 = params["critic"]       # (nt*H,ch),(ch,),(ch,1),(1,)

    vh, ph, ch = vw1.shape[1], pw1.shape[1], cw1.shape[1]
    ov = vw2.shape[1]                           # output_per_level (== 2)
    oc = pw2.shape[1] - 1                       # output_common
    hid_all = nt * vh + ph + ch
    out_lanes = 128
    n_policy = oc + ov * nt + 1                 # width of `out` (== 11 here)
    assert n_policy + 1 <= out_lanes

    # first linear: [verify block-diag | pulse | critic]
    w1 = jnp.zeros((nt * H, hid_all), jnp.float32)
    for i in range(nt):
        w1 = w1.at[i * H:(i + 1) * H, i * vh:(i + 1) * vh].set(vw1)
    w1 = w1.at[:, nt * vh:nt * vh + ph].set(pw1)
    w1 = w1.at[:, nt * vh + ph:].set(cw1)
    b1 = jnp.concatenate([jnp.tile(vb1, nt), pb1, cb1]).reshape(1, hid_all)

    # second linear: scatter into the final channel layout, zero-padded to 128
    w2 = jnp.zeros((hid_all, out_lanes), jnp.float32)
    b2 = jnp.zeros((out_lanes,), jnp.float32)
    for i in range(nt):
        w2 = w2.at[i * vh:(i + 1) * vh, oc + ov * i:oc + ov * (i + 1)].set(vw2)
        b2 = b2.at[oc + ov * i:oc + ov * (i + 1)].set(vb2)
    skip_col = oc + ov * nt
    w2 = w2.at[nt * vh:nt * vh + ph, 0:oc].set(pw2[:, :oc])
    w2 = w2.at[nt * vh:nt * vh + ph, skip_col:skip_col + 1].set(pw2[:, oc:oc + 1])
    b2 = b2.at[0:oc].set(pb2[:oc]).at[skip_col].set(pb2[oc])
    critic_col = skip_col + 1
    w2 = w2.at[nt * vh + ph:, critic_col:critic_col + 1].set(cw2)
    b2 = b2.at[critic_col].set(cb2[0])
    b2 = b2.reshape(1, out_lanes)

    return dict(targets=params["targets"], hidden_size=H, n_targets=nt,
                num_layers=len(params["rnn"]), layer_weights=layer_weights,
                w1_head=w1, b1_head=b1, w2_head=w2, b2_head=b2,
                n_policy=n_policy, out_lanes=out_lanes)


# --------------------------------------------------------------------------
# Forward pass: one pallas_call, tiny slicing in the wrapper
# --------------------------------------------------------------------------
def afpprnn_forward(packed, in_common, in_per_level, compute_critic=True):
    B, T, _ = in_common.shape
    nt = packed["n_targets"]
    N = nt * B
    targets = packed["targets"]

    # layer-0 input, time-major & flattened: row = t*N + i*B + b  (~2 KB)
    unit = jnp.ones((B, T, 1), jnp.float32)
    blocks = [jnp.concatenate(
        [in_common, targets[i] * unit, in_per_level[:, :, i]], axis=-1)
        for i in range(nt)]
    input_rnn = jnp.concatenate(blocks, axis=0)                 # (N, T, In)
    x0 = jnp.transpose(input_rnn, (1, 0, 2)).reshape(T * N, -1).astype(jnp.float32)

    kernel = _make_fused_kernel(n_steps=T, n_seq=N, batch=B, n_targets=nt,
                                num_layers=packed["num_layers"])
    slab = pl.pallas_call(
        kernel,
        out_shape=jax.ShapeDtypeStruct((T * B, packed["out_lanes"]), jnp.float32),
    )(x0, *packed["layer_weights"],
      packed["w1_head"], packed["b1_head"], packed["w2_head"], packed["b2_head"])

    slab = jnp.transpose(slab.reshape(T, B, -1), (1, 0, 2))     # (B, T, 128)
    out = slab[..., :packed["n_policy"]]
    critic_out = (slab[..., packed["n_policy"]:packed["n_policy"] + 1]
                  if compute_critic else None)
    return out, critic_out


# --------------------------------------------------------------------------
# Pure-JAX reference (mirrors the torch forward) for correctness checking
# --------------------------------------------------------------------------
def _ref_rnn_layer(x_tm, w_ih, w_hh, b_ih, b_hh):
    def step(h, x_t):
        h_new = jnp.tanh(x_t @ w_ih + h @ w_hh + b_ih + b_hh)
        return h_new, h_new
    h0 = jnp.zeros((x_tm.shape[1], w_hh.shape[0]), jnp.float32)
    _, hsq = lax.scan(step, h0, x_tm)
    return hsq


def _ref_mlp2(x, w1, b1, w2, b2):
    return jnp.maximum(x @ w1 + b1, 0.0) @ w2 + b2


def afpprnn_reference(params, in_common, in_per_level):
    B, T, _ = in_common.shape
    nt = params["targets"].shape[0]
    H = params["hidden_size"]
    unit = jnp.ones((B, T, 1), jnp.float32)
    input_rnn = jnp.concatenate(
        [jnp.concatenate([in_common, params["targets"][i] * unit,
                          in_per_level[:, :, i]], axis=-1) for i in range(nt)],
        axis=0)
    x_tm = jnp.transpose(input_rnn, (1, 0, 2))
    for (w_ih, w_hh, b_ih, b_hh) in params["rnn"]:
        x_tm = _ref_rnn_layer(x_tm, w_ih, w_hh, b_ih, b_hh)
    output = jnp.transpose(x_tm, (1, 0, 2))
    policy = _ref_mlp2(output.reshape(nt * B * T, H),
                       *params["verify"]).reshape(nt, B, T, -1)
    output_v = output.reshape(nt, B, T, H)
    input_agents = jnp.moveaxis(output_v, 0, 2).reshape(B, T, nt * H)
    pulse_tmp = _ref_mlp2(input_agents.reshape(B * T, nt * H),
                          *params["pulse"]).reshape(B, T, -1)
    pulse_policy = jnp.concatenate(
        [pulse_tmp[..., :-1]] + [policy[i, :, :, :2] for i in range(nt)],
        axis=-1)
    out = jnp.concatenate([pulse_policy, pulse_tmp[..., -1:]], axis=-1)
    critic_out = _ref_mlp2(input_agents.reshape(B * T, nt * H),
                           *params["critic"]).reshape(B, T, 1)
    return out, critic_out


# --------------------------------------------------------------------------
if __name__ == "__main__":
    # config (matches the module's forward; output_per_level must be 2)
    N_TARGETS = 4
    TARGETS_RAW = np.array([1.0, 2.0, 3.0, 4.0])
    IN_COMMON = 3
    IN_PER_LEVEL = 3
    HIDDEN = 32
    NUM_LAYERS = 2
    B, T = 2, 8

    params = make_params(
        jax.random.PRNGKey(42),
        n_targets=N_TARGETS, targets_raw=TARGETS_RAW,
        input_common=IN_COMMON, input_per_level=IN_PER_LEVEL,
        hidden=HIDDEN, num_layers=NUM_LAYERS,
        pulse_hidden=64, verify_hidden=32, critic_hidden=64,
        output_common=2, output_per_level=2)
    packed = pack_for_kernel(params)

    key = jax.random.PRNGKey(0)
    k1, k2 = jax.random.split(key)
    in_common = jax.random.normal(k1, (B, T, IN_COMMON), jnp.float32)
    in_per_level = jax.random.normal(k2, (B, T, N_TARGETS, IN_PER_LEVEL),
                                     jnp.float32)

    fwd = jax.jit(lambda ic, ipl: afpprnn_forward(packed, ic, ipl,
                                                  compute_critic=True))
    out, critic_out = fwd(in_common, in_per_level)
    out = jax.block_until_ready(out)
    critic_out = jax.block_until_ready(critic_out)

    ref_out, ref_critic = afpprnn_reference(params, in_common, in_per_level)

    assert out.shape == (B, T, 2 * (N_TARGETS + 1) + 1), out.shape
    assert critic_out.shape == (B, T, 1), critic_out.shape
    np.testing.assert_allclose(np.asarray(out), np.asarray(ref_out),
                               rtol=1e-5, atol=1e-5)
    np.testing.assert_allclose(np.asarray(critic_out), np.asarray(ref_critic),
                               rtol=1e-5, atol=1e-5)
    print("KERNEL_OK")
</pallas_src>

<mosaic_0001>
module attributes {stable_mosaic.version = 11 : i64} {
  func.func @kernel(%arg0: memref<64x7xf32, #tpu.memory_space<vmem>>, %arg1: memref<7x32xf32, #tpu.memory_space<vmem>>, %arg2: memref<32x32xf32, #tpu.memory_space<vmem>>, %arg3: memref<1x32xf32, #tpu.memory_space<vmem>>, %arg4: memref<32x32xf32, #tpu.memory_space<vmem>>, %arg5: memref<32x32xf32, #tpu.memory_space<vmem>>, %arg6: memref<1x32xf32, #tpu.memory_space<vmem>>, %arg7: memref<128x256xf32, #tpu.memory_space<vmem>>, %arg8: memref<1x256xf32, #tpu.memory_space<vmem>>, %arg9: memref<256x128xf32, #tpu.memory_space<vmem>>, %arg10: memref<1x128xf32, #tpu.memory_space<vmem>>, %arg11: memref<16x128xf32, #tpu.memory_space<vmem>>) attributes {dimension_semantics = [], scalar_prefetch = 0 : i64, scratch_operands = 0 : i64, tpu.core_type = #tpu.core_type<tc>} {
    %c0 = arith.constant 0 : index
    %c0_0 = arith.constant 0 : index
    %0 = vector.load %arg0[%c0, %c0_0] : memref<64x7xf32, #tpu.memory_space<vmem>>, vector<64x7xf32>
    %c0_1 = arith.constant 0 : index
    %c0_2 = arith.constant 0 : index
    %1 = vector.load %arg1[%c0_1, %c0_2] : memref<7x32xf32, #tpu.memory_space<vmem>>, vector<7x32xf32>
    %c0_3 = arith.constant 0 : index
    %c0_4 = arith.constant 0 : index
    %2 = vector.load %arg2[%c0_3, %c0_4] : memref<32x32xf32, #tpu.memory_space<vmem>>, vector<32x32xf32>
    %c0_5 = arith.constant 0 : index
    %c0_6 = arith.constant 0 : index
    %3 = vector.load %arg3[%c0_5, %c0_6] : memref<1x32xf32, #tpu.memory_space<vmem>>, vector<1x32xf32>
    %cst = arith.constant dense<0.000000e+00> : vector<64x32xf32>
    %4 = tpu.matmul %0, %1, %cst {dimension_numbers = #tpu.dot_dimension_numbers<[1], [0], [0], [1], [0, 0, 1, 1], [], []>} : vector<64x7xf32>, vector<7x32xf32>, vector<64x32xf32> -> vector<64x32xf32>
    %5 = vector.broadcast %3 : vector<1x32xf32> to vector<64x32xf32>
    %6 = arith.addf %4, %5 : vector<64x32xf32>
    %cst_7 = arith.constant 0.000000e+00 : f32
    %7 = vector.broadcast %cst_7 : f32 to vector<8x32xf32>
    %8 = vector.extract_strided_slice %6 {offsets = [0, 0], sizes = [8, 32], strides = [1, 1]} : vector<64x32xf32> to vector<8x32xf32>
    %cst_8 = arith.constant dense<0.000000e+00> : vector<8x32xf32>
    %9 = tpu.matmul %7, %2, %cst_8 {dimension_numbers = #tpu.dot_dimension_numbers<[1], [0], [0], [1], [0, 0, 1, 1], [], []>} : vector<8x32xf32>, vector<32x32xf32>, vector<8x32xf32> -> vector<8x32xf32>
    %10 = arith.addf %8, %9 : vector<8x32xf32>
    %11 = math.tanh %10 : vector<8x32xf32>
    %12 = vector.extract_strided_slice %6 {offsets = [8, 0], sizes = [8, 32], strides = [1, 1]} : vector<64x32xf32> to vector<8x32xf32>
    %cst_9 = arith.constant dense<0.000000e+00> : vector<8x32xf32>
    %13 = tpu.matmul %11, %2, %cst_9 {dimension_numbers = #tpu.dot_dimension_numbers<[1], [0], [0], [1], [0, 0, 1, 1], [], []>} : vector<8x32xf32>, vector<32x32xf32>, vector<8x32xf32> -> vector<8x32xf32>
    %14 = arith.addf %12, %13 : vector<8x32xf32>
    %15 = math.tanh %14 : vector<8x32xf32>
    %16 = vector.extract_strided_slice %6 {offsets = [16, 0], sizes = [8, 32], strides = [1, 1]} : vector<64x32xf32> to vector<8x32xf32>
    %cst_10 = arith.constant dense<0.000000e+00> : vector<8x32xf32>
    %17 = tpu.matmul %15, %2, %cst_10 {dimension_numbers = #tpu.dot_dimension_numbers<[1], [0], [0], [1], [0, 0, 1, 1], [], []>} : vector<8x32xf32>, vector<32x32xf32>, vector<8x32xf32> -> vector<8x32xf32>
    %18 = arith.addf %16, %17 : vector<8x32xf32>
    %19 = math.tanh %18 : vector<8x32xf32>
    %20 = vector.extract_strided_slice %6 {offsets = [24, 0], sizes = [8, 32], strides = [1, 1]} : vector<64x32xf32> to vector<8x32xf32>
    %cst_11 = arith.constant dense<0.000000e+00> : vector<8x32xf32>
    %21 = tpu.matmul %19, %2, %cst_11 {dimension_numbers = #tpu.dot_dimension_numbers<[1], [0], [0], [1], [0, 0, 1, 1], [], []>} : vector<8x32xf32>, vector<32x32xf32>, vector<8x32xf32> -> vector<8x32xf32>
    %22 = arith.addf %20, %21 : vector<8x32xf32>
    %23 = math.tanh %22 : vector<8x32xf32>
    %24 = vector.extract_strided_slice %6 {offsets = [32, 0], sizes = [8, 32], strides = [1, 1]} : vector<64x32xf32> to vector<8x32xf32>
    %cst_12 = arith.constant dense<0.000000e+00> : vector<8x32xf32>
    %25 = tpu.matmul %23, %2, %cst_12 {dimension_numbers = #tpu.dot_dimension_numbers<[1], [0], [0], [1], [0, 0, 1, 1], [], []>} : vector<8x32xf32>, vector<32x32xf32>, vector<8x32xf32> -> vector<8x32xf32>
    %26 = arith.addf %24, %25 : vector<8x32xf32>
    %27 = math.tanh %26 : vector<8x32xf32>
    %28 = vector.extract_strided_slice %6 {offsets = [40, 0], sizes = [8, 32], strides = [1, 1]} : vector<64x32xf32> to vector<8x32xf32>
    %cst_13 = arith.constant dense<0.000000e+00> : vector<8x32xf32>
    %29 = tpu.matmul %27, %2, %cst_13 {dimension_numbers = #tpu.dot_dimension_numbers<[1], [0], [0], [1], [0, 0, 1, 1], [], []>} : vector<8x32xf32>, vector<32x32xf32>, vector<8x32xf32> -> vector<8x32xf32>
    %30 = arith.addf %28, %29 : vector<8x32xf32>
    %31 = math.tanh %30 : vector<8x32xf32>
    %32 = vector.extract_strided_slice %6 {offsets = [48, 0], sizes = [8, 32], strides = [1, 1]} : vector<64x32xf32> to vector<8x32xf32>
    %cst_14 = arith.constant dense<0.000000e+00> : vector<8x32xf32>
    %33 = tpu.matmul %31, %2, %cst_14 {dimension_numbers = #tpu.dot_dimension_numbers<[1], [0], [0], [1], [0, 0, 1, 1], [], []>} : vector<8x32xf32>, vector<32x32xf32>, vector<8x32xf32> -> vector<8x32xf32>
    %34 = arith.addf %32, %33 : vector<8x32xf32>
    %35 = math.tanh %34 : vector<8x32xf32>
    %36 = vector.extract_strided_slice %6 {offsets = [56, 0], sizes = [8, 32], strides = [1, 1]} : vector<64x32xf32> to vector<8x32xf32>
    %cst_15 = arith.constant dense<0.000000e+00> : vector<8x32xf32>
    %37 = tpu.matmul %35, %2, %cst_15 {dimension_numbers = #tpu.dot_dimension_numbers<[1], [0], [0], [1], [0, 0, 1, 1], [], []>} : vector<8x32xf32>, vector<32x32xf32>, vector<8x32xf32> -> vector<8x32xf32>
    %38 = arith.addf %36, %37 : vector<8x32xf32>
    %39 = math.tanh %38 : vector<8x32xf32>
    %40 = tpu.concatenate %11, %15, %19, %23, %27, %31, %35, %39 in 0 : vector<8x32xf32>, vector<8x32xf32>, vector<8x32xf32>, vector<8x32xf32>, vector<8x32xf32>, vector<8x32xf32>, vector<8x32xf32>, vector<8x32xf32> -> vector<64x32xf32>
    %c0_16 = arith.constant 0 : index
    %c0_17 = arith.constant 0 : index
    %41 = vector.load %arg4[%c0_16, %c0_17] : memref<32x32xf32, #tpu.memory_space<vmem>>, vector<32x32xf32>
    %c0_18 = arith.constant 0 : index
    %c0_19 = arith.constant 0 : index
    %42 = vector.load %arg5[%c0_18, %c0_19] : memref<32x32xf32, #tpu.memory_space<vmem>>, vector<32x32xf32>
    %c0_20 = arith.constant 0 : index
    %c0_21 = arith.constant 0 : index
    %43 = vector.load %arg6[%c0_20, %c0_21] : memref<1x32xf32, #tpu.memory_space<vmem>>, vector<1x32xf32>
    %cst_22 = arith.constant dense<0.000000e+00> : vector<64x32xf32>
    %44 = tpu.matmul %40, %41, %cst_22 {dimension_numbers = #tpu.dot_dimension_numbers<[1], [0], [0], [1], [0, 0, 1, 1], [], []>} : vector<64x32xf32>, vector<32x32xf32>, vector<64x32xf32> -> vector<64x32xf32>
    %45 = vector.broadcast %43 : vector<1x32xf32> to vector<64x32xf32>
    %46 = arith.addf %44, %45 : vector<64x32xf32>
    %cst_23 = arith.constant 0.000000e+00 : f32
    %47 = vector.broadcast %cst_23 : f32 to vector<8x32xf32>
    %48 = vector.extract_strided_slice %46 {offsets = [0, 0], sizes = [8, 32], strides = [1, 1]} : vector<64x32xf32> to vector<8x32xf32>
    %cst_24 = arith.constant dense<0.000000e+00> : vector<8x32xf32>
    %49 = tpu.matmul %47, %42, %cst_24 {dimension_numbers = #tpu.dot_dimension_numbers<[1], [0], [0], [1], [0, 0, 1, 1], [], []>} : vector<8x32xf32>, vector<32x32xf32>, vector<8x32xf32> -> vector<8x32xf32>
    %50 = arith.addf %48, %49 : vector<8x32xf32>
    %51 = math.tanh %50 : vector<8x32xf32>
    %52 = vector.extract_strided_slice %46 {offsets = [8, 0], sizes = [8, 32], strides = [1, 1]} : vector<64x32xf32> to vector<8x32xf32>
    %cst_25 = arith.constant dense<0.000000e+00> : vector<8x32xf32>
    %53 = tpu.matmul %51, %42, %cst_25 {dimension_numbers = #tpu.dot_dimension_numbers<[1], [0], [0], [1], [0, 0, 1, 1], [], []>} : vector<8x32xf32>, vector<32x32xf32>, vector<8x32xf32> -> vector<8x32xf32>
    %54 = arith.addf %52, %53 : vector<8x32xf32>
    %55 = math.tanh %54 : vector<8x32xf32>
    %56 = vector.extract_strided_slice %46 {offsets = [16, 0], sizes = [8, 32], strides = [1, 1]} : vector<64x32xf32> to vector<8x32xf32>
    %cst_26 = arith.constant dense<0.000000e+00> : vector<8x32xf32>
    %57 = tpu.matmul %55, %42, %cst_26 {dimension_numbers = #tpu.dot_dimension_numbers<[1], [0], [0], [1], [0, 0, 1, 1], [], []>} : vector<8x32xf32>, vector<32x32xf32>, vector<8x32xf32> -> vector<8x32xf32>
    %58 = arith.addf %56, %57 : vector<8x32xf32>
    %59 = math.tanh %58 : vector<8x32xf32>
    %60 = vector.extract_strided_slice %46 {offsets = [24, 0], sizes = [8, 32], strides = [1, 1]} : vector<64x32xf32> to vector<8x32xf32>
    %cst_27 = arith.constant dense<0.000000e+00> : vector<8x32xf32>
    %61 = tpu.matmul %59, %42, %cst_27 {dimension_numbers = #tpu.dot_dimension_numbers<[1], [0], [0], [1], [0, 0, 1, 1], [], []>} : vector<8x32xf32>, vector<32x32xf32>, vector<8x32xf32> -> vector<8x32xf32>
    %62 = arith.addf %60, %61 : vector<8x32xf32>
    %63 = math.tanh %62 : vector<8x32xf32>
    %64 = vector.extract_strided_slice %46 {offsets = [32, 0], sizes = [8, 32], strides = [1, 1]} : vector<64x32xf32> to vector<8x32xf32>
    %cst_28 = arith.constant dense<0.000000e+00> : vector<8x32xf32>
    %65 = tpu.matmul %63, %42, %cst_28 {dimension_numbers = #tpu.dot_dimension_numbers<[1], [0], [0], [1], [0, 0, 1, 1], [], []>} : vector<8x32xf32>, vector<32x32xf32>, vector<8x32xf32> -> vector<8x32xf32>
    %66 = arith.addf %64, %65 : vector<8x32xf32>
    %67 = math.tanh %66 : vector<8x32xf32>
    %68 = vector.extract_strided_slice %46 {offsets = [40, 0], sizes = [8, 32], strides = [1, 1]} : vector<64x32xf32> to vector<8x32xf32>
    %cst_29 = arith.constant dense<0.000000e+00> : vector<8x32xf32>
    %69 = tpu.matmul %67, %42, %cst_29 {dimension_numbers = #tpu.dot_dimension_numbers<[1], [0], [0], [1], [0, 0, 1, 1], [], []>} : vector<8x32xf32>, vector<32x32xf32>, vector<8x32xf32> -> vector<8x32xf32>
    %70 = arith.addf %68, %69 : vector<8x32xf32>
    %71 = math.tanh %70 : vector<8x32xf32>
    %72 = vector.extract_strided_slice %46 {offsets = [48, 0], sizes = [8, 32], strides = [1, 1]} : vector<64x32xf32> to vector<8x32xf32>
    %cst_30 = arith.constant dense<0.000000e+00> : vector<8x32xf32>
    %73 = tpu.matmul %71, %42, %cst_30 {dimension_numbers = #tpu.dot_dimension_numbers<[1], [0], [0], [1], [0, 0, 1, 1], [], []>} : vector<8x32xf32>, vector<32x32xf32>, vector<8x32xf32> -> vector<8x32xf32>
    %74 = arith.addf %72, %73 : vector<8x32xf32>
    %75 = math.tanh %74 : vector<8x32xf32>
    %76 = vector.extract_strided_slice %46 {offsets = [56, 0], sizes = [8, 32], strides = [1, 1]} : vector<64x32xf32> to vector<8x32xf32>
    %cst_31 = arith.constant dense<0.000000e+00> : vector<8x32xf32>
    %77 = tpu.matmul %75, %42, %cst_31 {dimension_numbers = #tpu.dot_dimension_numbers<[1], [0], [0], [1], [0, 0, 1, 1], [], []>} : vector<8x32xf32>, vector<32x32xf32>, vector<8x32xf32> -> vector<8x32xf32>
    %78 = arith.addf %76, %77 : vector<8x32xf32>
    %79 = math.tanh %78 : vector<8x32xf32>
    %80 = vector.extract_strided_slice %51 {offsets = [0, 0], sizes = [2, 32], strides = [1, 1]} : vector<8x32xf32> to vector<2x32xf32>
    %81 = vector.extract_strided_slice %51 {offsets = [2, 0], sizes = [2, 32], strides = [1, 1]} : vector<8x32xf32> to vector<2x32xf32>
    %82 = vector.extract_strided_slice %51 {offsets = [4, 0], sizes = [2, 32], strides = [1, 1]} : vector<8x32xf32> to vector<2x32xf32>
    %83 = vector.extract_strided_slice %51 {offsets = [6, 0], sizes = [2, 32], strides = [1, 1]} : vector<8x32xf32> to vector<2x32xf32>
    %84 = tpu.concatenate %80, %81, %82, %83 in 1 : vector<2x32xf32>, vector<2x32xf32>, vector<2x32xf32>, vector<2x32xf32> -> vector<2x128xf32>
    %85 = vector.extract_strided_slice %55 {offsets = [0, 0], sizes = [2, 32], strides = [1, 1]} : vector<8x32xf32> to vector<2x32xf32>
    %86 = vector.extract_strided_slice %55 {offsets = [2, 0], sizes = [2, 32], strides = [1, 1]} : vector<8x32xf32> to vector<2x32xf32>
    %87 = vector.extract_strided_slice %55 {offsets = [4, 0], sizes = [2, 32], strides = [1, 1]} : vector<8x32xf32> to vector<2x32xf32>
    %88 = vector.extract_strided_slice %55 {offsets = [6, 0], sizes = [2, 32], strides = [1, 1]} : vector<8x32xf32> to vector<2x32xf32>
    %89 = tpu.concatenate %85, %86, %87, %88 in 1 : vector<2x32xf32>, vector<2x32xf32>, vector<2x32xf32>, vector<2x32xf32> -> vector<2x128xf32>
    %90 = vector.extract_strided_slice %59 {offsets = [0, 0], sizes = [2, 32], strides = [1, 1]} : vector<8x32xf32> to vector<2x32xf32>
    %91 = vector.extract_strided_slice %59 {offsets = [2, 0], sizes = [2, 32], strides = [1, 1]} : vector<8x32xf32> to vector<2x32xf32>
    %92 = vector.extract_strided_slice %59 {offsets = [4, 0], sizes = [2, 32], strides = [1, 1]} : vector<8x32xf32> to vector<2x32xf32>
    %93 = vector.extract_strided_slice %59 {offsets = [6, 0], sizes = [2, 32], strides = [1, 1]} : vector<8x32xf32> to vector<2x32xf32>
    %94 = tpu.concatenate %90, %91, %92, %93 in 1 : vector<2x32xf32>, vector<2x32xf32>, vector<2x32xf32>, vector<2x32xf32> -> vector<2x128xf32>
    %95 = vector.extract_strided_slice %63 {offsets = [0, 0], sizes = [2, 32], strides = [1, 1]} : vector<8x32xf32> to vector<2x32xf32>
    %96 = vector.extract_strided_slice %63 {offsets = [2, 0], sizes = [2, 32], strides = [1, 1]} : vector<8x32xf32> to vector<2x32xf32>
    %97 = vector.extract_strided_slice %63 {offsets = [4, 0], sizes = [2, 32], strides = [1, 1]} : vector<8x32xf32> to vector<2x32xf32>
    %98 = vector.extract_strided_slice %63 {offsets = [6, 0], sizes = [2, 32], strides = [1, 1]} : vector<8x32xf32> to vector<2x32xf32>
    %99 = tpu.concatenate %95, %96, %97, %98 in 1 : vector<2x32xf32>, vector<2x32xf32>, vector<2x32xf32>, vector<2x32xf32> -> vector<2x128xf32>
    %100 = vector.extract_strided_slice %67 {offsets = [0, 0], sizes = [2, 32], strides = [1, 1]} : vector<8x32xf32> to vector<2x32xf32>
    %101 = vector.extract_strided_slice %67 {offsets = [2, 0], sizes = [2, 32], strides = [1, 1]} : vector<8x32xf32> to vector<2x32xf32>
    %102 = vector.extract_strided_slice %67 {offsets = [4, 0], sizes = [2, 32], strides = [1, 1]} : vector<8x32xf32> to vector<2x32xf32>
    %103 = vector.extract_strided_slice %67 {offsets = [6, 0], sizes = [2, 32], strides = [1, 1]} : vector<8x32xf32> to vector<2x32xf32>
    %104 = tpu.concatenate %100, %101, %102, %103 in 1 : vector<2x32xf32>, vector<2x32xf32>, vector<2x32xf32>, vector<2x32xf32> -> vector<2x128xf32>
    %105 = vector.extract_strided_slice %71 {offsets = [0, 0], sizes = [2, 32], strides = [1, 1]} : vector<8x32xf32> to vector<2x32xf32>
    %106 = vector.extract_strided_slice %71 {offsets = [2, 0], sizes = [2, 32], strides = [1, 1]} : vector<8x32xf32> to vector<2x32xf32>
    %107 = vector.extract_strided_slice %71 {offsets = [4, 0], sizes = [2, 32], strides = [1, 1]} : vector<8x32xf32> to vector<2x32xf32>
    %108 = vector.extract_strided_slice %71 {offsets = [6, 0], sizes = [2, 32], strides = [1, 1]} : vector<8x32xf32> to vector<2x32xf32>
    %109 = tpu.concatenate %105, %106, %107, %108 in 1 : vector<2x32xf32>, vector<2x32xf32>, vector<2x32xf32>, vector<2x32xf32> -> vector<2x128xf32>
    %110 = vector.extract_strided_slice %75 {offsets = [0, 0], sizes = [2, 32], strides = [1, 1]} : vector<8x32xf32> to vector<2x32xf32>
    %111 = vector.extract_strided_slice %75 {offsets = [2, 0], sizes = [2, 32], strides = [1, 1]} : vector<8x32xf32> to vector<2x32xf32>
    %112 = vector.extract_strided_slice %75 {offsets = [4, 0], sizes = [2, 32], strides = [1, 1]} : vector<8x32xf32> to vector<2x32xf32>
    %113 = vector.extract_strided_slice %75 {offsets = [6, 0], sizes = [2, 32], strides = [1, 1]} : vector<8x32xf32> to vector<2x32xf32>
    %114 = tpu.concatenate %110, %111, %112, %113 in 1 : vector<2x32xf32>, vector<2x32xf32>, vector<2x32xf32>, vector<2x32xf32> -> vector<2x128xf32>
    %115 = vector.extract_strided_slice %79 {offsets = [0, 0], sizes = [2, 32], strides = [1, 1]} : vector<8x32xf32> to vector<2x32xf32>
    %116 = vector.extract_strided_slice %79 {offsets = [2, 0], sizes = [2, 32], strides = [1, 1]} : vector<8x32xf32> to vector<2x32xf32>
    %117 = vector.extract_strided_slice %79 {offsets = [4, 0], sizes = [2, 32], strides = [1, 1]} : vector<8x32xf32> to vector<2x32xf32>
    %118 = vector.extract_strided_slice %79 {offsets = [6, 0], sizes = [2, 32], strides = [1, 1]} : vector<8x32xf32> to vector<2x32xf32>
    %119 = tpu.concatenate %115, %116, %117, %118 in 1 : vector<2x32xf32>, vector<2x32xf32>, vector<2x32xf32>, vector<2x32xf32> -> vector<2x128xf32>
    %120 = tpu.concatenate %84, %89, %94, %99, %104, %109, %114, %119 in 0 : vector<2x128xf32>, vector<2x128xf32>, vector<2x128xf32>, vector<2x128xf32>, vector<2x128xf32>, vector<2x128xf32>, vector<2x128xf32>, vector<2x128xf32> -> vector<16x128xf32>
    %c0_32 = arith.constant 0 : index
    %c0_33 = arith.constant 0 : index
    %121 = vector.load %arg7[%c0_32, %c0_33] : memref<128x256xf32, #tpu.memory_space<vmem>>, vector<128x256xf32>
    %cst_34 = arith.constant dense<0.000000e+00> : vector<16x256xf32>
    %122 = tpu.matmul %120, %121, %cst_34 {dimension_numbers = #tpu.dot_dimension_numbers<[1], [0], [0], [1], [0, 0, 1, 1], [], []>} : vector<16x128xf32>, vector<128x256xf32>, vector<16x256xf32> -> vector<16x256xf32>
    %c0_35 = arith.constant 0 : index
    %c0_36 = arith.constant 0 : index
    %123 = vector.load %arg8[%c0_35, %c0_36] : memref<1x256xf32, #tpu.memory_space<vmem>>, vector<1x256xf32>
    %124 = vector.broadcast %123 : vector<1x256xf32> to vector<16x256xf32>
    %125 = arith.addf %122, %124 : vector<16x256xf32>
    %cst_37 = arith.constant 0.000000e+00 : f32
    %126 = vector.broadcast %cst_37 : f32 to vector<16x256xf32>
    %127 = arith.maximumf %125, %126 : vector<16x256xf32>
    %c0_38 = arith.constant 0 : index
    %c0_39 = arith.constant 0 : index
    %128 = vector.load %arg9[%c0_38, %c0_39] : memref<256x128xf32, #tpu.memory_space<vmem>>, vector<256x128xf32>
    %cst_40 = arith.constant dense<0.000000e+00> : vector<16x128xf32>
    %129 = tpu.matmul %127, %128, %cst_40 {dimension_numbers = #tpu.dot_dimension_numbers<[1], [0], [0], [1], [0, 0, 1, 1], [], []>} : vector<16x256xf32>, vector<256x128xf32>, vector<16x128xf32> -> vector<16x128xf32>
    %c0_41 = arith.constant 0 : index
    %c0_42 = arith.constant 0 : index
    %130 = vector.load %arg10[%c0_41, %c0_42] : memref<1x128xf32, #tpu.memory_space<vmem>>, vector<1x128xf32>
    %131 = vector.broadcast %130 : vector<1x128xf32> to vector<16x128xf32>
    %132 = arith.addf %129, %131 : vector<16x128xf32>
    %c0_43 = arith.constant 0 : index
    %c0_44 = arith.constant 0 : index
    %133 = vector.load %arg11[%c0_43, %c0_44] : memref<16x128xf32, #tpu.memory_space<vmem>>, vector<16x128xf32>
    tpu.vector_store %arg11[%c0_43, %c0_44], %132 {strides = array<i32>} : memref<16x128xf32, #tpu.memory_space<vmem>>, vector<16x128xf32>,
    return
  }
}

</mosaic_0001>

<llo_original>
// kernel: _lambda_.1
$region0: #{_lambda_.1}
  #allocation0 [shape = 'u32[]', space=smem, size = 0x4, offset = 0x4, fixed_abs, tag = 'smem constant byte address 0x4 - core index']
  #allocation1 [shape = 'u32[72,128]{1,0:T(1,128)}', space=vmem, size = 0x9000, scoped, tag = 'internal scratch']
  %s0 = inlined_call_operand.vmem [shape: f32[64,7], index: 0, kind: input, shape index: {}]
  %s1 = inlined_call_operand.vmem [shape: f32[7,32], index: 1, kind: input, shape index: {}]
  %s2 = inlined_call_operand.vmem [shape: f32[32,32], index: 2, kind: input, shape index: {}]
  %s3 = inlined_call_operand.vmem [shape: f32[1,32], index: 3, kind: input, shape index: {}]
  %s4 = inlined_call_operand.vmem [shape: f32[32,32], index: 4, kind: input, shape index: {}]
  %s5 = inlined_call_operand.vmem [shape: f32[32,32], index: 5, kind: input, shape index: {}]
  %s6 = inlined_call_operand.vmem [shape: f32[1,32], index: 6, kind: input, shape index: {}]
  %s7 = inlined_call_operand.hbm [shape: f32[128,256], index: 7, kind: input, shape index: {}]
  %s8 = inlined_call_operand.vmem [shape: f32[1,256], index: 8, kind: input, shape index: {}]
  %s9 = inlined_call_operand.hbm [shape: f32[256,128], index: 9, kind: input, shape index: {}]
  %s10 = inlined_call_operand.vmem [shape: f32[1,128], index: 10, kind: input, shape index: {}]
  %s11 = inlined_call_operand.vmem [shape: f32[16,128], index: 11, kind: output, shape index: {}]
  %s12 = sld [smem:[#allocation0]]
  $region62: #{_lambda_.1} parent=0
    _
  %s14 = ssub.s32 1, %s12
  %s15 = scalar_select 0, %s14, %s12
  $region1: #{_lambda_.1} parent=0
    #allocation2 [shape = 'u8[131072]{0}', space=vmem, size = 0x20000, scoped, tag = 'input window, operand 7, single buffered']
    #allocation3 [shape = 's32[1]{0}', space=sflag, size = 0x4, scoped, tag = 'scoped memory for _lambda_.1']
    #allocation4 [shape = 'u8[131072]{0}', space=vmem, size = 0x20000, scoped, tag = 'input window, operand 9, single buffered']
    #allocation5 [shape = 's32[1]{0}', space=sflag, size = 0x4, scoped, tag = 'scoped memory for _lambda_.1']
    %16 = vsyncpa [#allocation3], 0
    %17 = vsyncpa [#allocation5], 0
    // Predicated region
    $region2: #{_lambda_.1} parent=1 // pred_check
      _
    $region3: #{_lambda_.1} parent=1 // pred_check_branch
      %19 = sbr.rel (0) target = $region5
    $region4: #{_lambda_.1} parent=1 // pred_region
      _
    $region5: #{_lambda_.1} parent=1 // pred_fallthru
      _
    // Predicated region
    $region6: #{_lambda_.1} parent=1 // pred_check
      _
    $region7: #{_lambda_.1} parent=1 // pred_check_branch
      %21 = sbr.rel (0) target = $region9
    $region8: #{_lambda_.1} parent=1 // pred_region
      _
    $region9: #{_lambda_.1} parent=1 // pred_fallthru
      _
    // Predicated region
    $region10: #{_lambda_.1} parent=1 // pred_check
      _
    $region11: #{_lambda_.1} parent=1 // pred_check_branch
      %23 = sbr.rel (0) target = $region13
    $region12: #{_lambda_.1} parent=1 // pred_region
      _
    $region13: #{_lambda_.1} parent=1 // pred_fallthru
      _
    // Predicated region
    $region14: #{_lambda_.1} parent=1 // pred_check
      _
    $region15: #{_lambda_.1} parent=1 // pred_check_branch
      %25 = sbr.rel (0) target = $region17
    $region16: #{_lambda_.1} parent=1 // pred_region
      _
    $region17: #{_lambda_.1} parent=1 // pred_fallthru
      _
    // Predicated region
    $region18: #{_lambda_.1} parent=1 // pred_check
      _
    $region19: #{_lambda_.1} parent=1 // pred_check_branch
      %27 = sbr.rel (0) target = $region21
    $region20: #{_lambda_.1} parent=1 // pred_region
      _
    $region21: #{_lambda_.1} parent=1 // pred_fallthru
      _
    // Predicated region
    $region22: #{_lambda_.1} parent=1 // pred_check
      _
    $region23: #{_lambda_.1} parent=1 // pred_check_branch
      %29 = sbr.rel (0) target = $region25
    $region24: #{_lambda_.1} parent=1 // pred_region
      _
    $region25: #{_lambda_.1} parent=1 // pred_fallthru
      _
    // Predicated region
    $region26: #{_lambda_.1} parent=1 // pred_check
      _
    $region27: #{_lambda_.1} parent=1 // pred_check_branch
      %31 = sbr.rel (0) target = $region29
    $region28: #{_lambda_.1} parent=1 // pred_region
      _
    $region29: #{_lambda_.1} parent=1 // pred_fallthru
      _
    // Predicated region
    $region30: #{_lambda_.1} parent=1 // pred_check
      _
    $region31: #{_lambda_.1} parent=1 // pred_check_branch
      %33 = sbr.rel (0) target = $region33
    $region32: #{_lambda_.1} parent=1 // pred_region
      %35 = vsyncadd [#allocation3], 0
      %s36 = sshll.u32 %s7, 4
      %s37 = int_to_ptr.hbm [resolvable:$true] %s36
      %s38 = sshll.u32 [#allocation2], 4
      %s39 = int_to_ptr.vmem [resolvable:$true] %s38
      %44 = dma.hbm_to_vmem [thread:$0]  %s37, 4096, %s39, [#allocation3], 256, 256, 16
    $region33: #{_lambda_.1} parent=1 // pred_fallthru
      _
    // Predicated region
    $region34: #{_lambda_.1} parent=1 // pred_check
      _
    $region35: #{_lambda_.1} parent=1 // pred_check_branch
      %46 = sbr.rel (0) target = $region37
    $region36: #{_lambda_.1} parent=1 // pred_region
      _
    $region37: #{_lambda_.1} parent=1 // pred_fallthru
      _
    // Predicated region
    $region38: #{_lambda_.1} parent=1 // pred_check
      _
    $region39: #{_lambda_.1} parent=1 // pred_check_branch
      %48 = sbr.rel (0) target = $region41
    $region40: #{_lambda_.1} parent=1 // pred_region
      %50 = vsyncadd [#allocation5], 0
      %s51 = sshll.u32 %s9, 4
      %s52 = int_to_ptr.hbm [resolvable:$true] %s51
      %s53 = sshll.u32 [#allocation4], 4
      %s54 = int_to_ptr.vmem [resolvable:$true] %s53
      %59 = dma.hbm_to_vmem [thread:$0]  %s52, 4096, %s54, [#allocation5], 128, 128, 8
    $region41: #{_lambda_.1} parent=1 // pred_fallthru
      _
    // Predicated region
    $region42: #{_lambda_.1} parent=1 // pred_check
      _
    $region43: #{_lambda_.1} parent=1 // pred_check_branch
      %61 = sbr.rel (0) target = $region45
    $region44: #{_lambda_.1} parent=1 // pred_region
      _
    $region45: #{_lambda_.1} parent=1 // pred_fallthru
      _
    // Predicated region
    $region46: #{_lambda_.1} parent=1 // pred_check
      _
    $region47: #{_lambda_.1} parent=1 // pred_check_branch
      %63 = sbr.rel (0) target = $region49
    $region48: #{_lambda_.1} parent=1 // pred_region
      %65 = dma.done [#allocation3], 4096
    $region49: #{_lambda_.1} parent=1 // pred_fallthru
      _
    // Predicated region
    $region50: #{_lambda_.1} parent=1 // pred_check
      _
    $region51: #{_lambda_.1} parent=1 // pred_check_branch
      %67 = sbr.rel (0) target = $region53
    $region52: #{_lambda_.1} parent=1 // pred_region
      %69 = dma.done [#allocation5], 4096
    $region53: #{_lambda_.1} parent=1 // pred_fallthru
      _
    %v70 = vld [vmem:[%s0] sm:$0xff]
    %v71 = vld [vmem:[%s0 + $0x8] sm:$0xff]
    %v72 = vld [vmem:[%s0 + $0x10] sm:$0xff]
    %v73 = vld [vmem:[%s0 + $0x18] sm:$0xff]
    %v74 = vld [vmem:[%s0 + $0x20] sm:$0xff]
    %v75 = vld [vmem:[%s0 + $0x28] sm:$0xff]
    %v76 = vld [vmem:[%s0 + $0x30] sm:$0xff]
    %v77 = vld [vmem:[%s0 + $0x38] sm:$0xff]
    %v78 = vld [vmem:[%s1] sm:$0x7f]
    %v79 = vld [vmem:[%s2] sm:$0xff]
    %v80 = vld [vmem:[%s2 + $0x8] sm:$0xff]
    %v81 = vld [vmem:[%s2 + $0x10] sm:$0xff]
    %v82 = vld [vmem:[%s2 + $0x18] sm:$0xff]
    %v83 = vld [vmem:[%s3] sm:$0x1]
    %v85 = vperm.slane %v83, 0
    %vm87 = vcmask 56320
    %v89 = vsel %vm87, %v70, 0
    %v92 = vsel %vm87, %v71, 0
    %v95 = vsel %vm87, %v72, 0
    %v98 = vsel %vm87, %v73, 0
    %v101 = vsel %vm87, %v74, 0
    %v104 = vsel %vm87, %v75, 0
    %v107 = vsel %vm87, %v76, 0
    %v110 = vsel %vm87, %v77, 0
    %vm112 = vcmask 1046528
    %v114 = vsel %vm112, %v78, 0
    %116 = vmatpush.msra.mxu0 0.0
    %117 = vmatpush.msra.mxu0 0.0
    %118 = vmatpush.msra.mxu0 0.0
    %119 = vmatpush.msra.mxu0 0.0
    %120 = vmatpush.msra.mxu0 0.0
    %121 = vmatpush.msra.mxu0 0.0
    %122 = vmatpush.msra.mxu0 0.0
    %123 = vmatpush.msra.mxu0 0.0
    %124 = vmatpush.msra.mxu0 0.0
    %125 = vmatpush.msra.mxu0 0.0
    %126 = vmatpush.msra.mxu0 0.0
    %127 = vmatpush.msra.mxu0 0.0
    %128 = vmatpush.msra.mxu0 0.0
    %129 = vmatpush.msra.mxu0 0.0
    %130 = vmatpush.msra.mxu0 0.0
    %131 = vmatpush.msra.mxu0 %v114
    %132 = vmatmul.f32.gmra.mxu0 %v89
    %v133 = vpop.f32.mrf.mxu0
    %v134 = vadd.f32 %v85, %v133
    %135 = vmatmul.f32.gmra.mxu0 %v92
    %v136 = vpop.f32.mrf.mxu0
    %v137 = vadd.f32 %v85, %v136
    %138 = vmatmul.f32.gmra.mxu0 %v95
    %v139 = vpop.f32.mrf.mxu0
    %v140 = vadd.f32 %v85, %v139
    %141 = vmatmul.f32.gmra.mxu0 %v98
    %v142 = vpop.f32.mrf.mxu0
    %v143 = vadd.f32 %v85, %v142
    %144 = vmatmul.f32.gmra.mxu0 %v101
    %v145 = vpop.f32.mrf.mxu0
    %v146 = vadd.f32 %v85, %v145
    %147 = vmatmul.f32.gmra.mxu0 %v104
    %v148 = vpop.f32.mrf.mxu0
    %v149 = vadd.f32 %v85, %v148
    %150 = vmatmul.f32.gmra.mxu0 %v107
    %v151 = vpop.f32.mrf.mxu0
    %v152 = vadd.f32 %v85, %v151
    %153 = vmatmul.f32.gmra.mxu0 %v110
    %v154 = vpop.f32.mrf.mxu0
    %v155 = vadd.f32 %v85, %v154
    %156 = vdwg.mxu0
    %vm157 = vcmask 261120
    %v159 = vsel %vm157, 0.0, 0
    %161 = vmatpush.msra.mxu0 0.0
    %162 = vmatpush.msra.mxu0 0.0
    %163 = vmatpush.msra.mxu0 0.0
    %164 = vmatpush.msra.mxu0 0.0
    %165 = vmatpush.msra.mxu0 0.0
    %166 = vmatpush.msra.mxu0 0.0
    %167 = vmatpush.msra.mxu0 0.0
    %168 = vmatpush.msra.mxu0 0.0
    %169 = vmatpush.msra.mxu0 0.0
    %170 = vmatpush.msra.mxu0 0.0
    %171 = vmatpush.msra.mxu0 0.0
    %172 = vmatpush.msra.mxu0 0.0
    %173 = vmatpush.msra.mxu0 %v82
    %174 = vmatpush.msra.mxu0 %v81
    %175 = vmatpush.msra.mxu0 %v80
    %176 = vmatpush.msra.mxu0 %v79
    %177 = vmatmul.f32.gmra.mxu0 %v159
    %v178 = vpop.f32.mrf.mxu0
    %v179 = vadd.f32 0.0, %v178
    %180 = vdwg.mxu0
    %v181 = vadd.f32 %v134, %v179
    %v182 = vtanh.pop %v181
    %v184 = vsel %vm157, %v182, 0
    %186 = vmatpush.msra.mxu0 0.0
    %187 = vmatpush.msra.mxu0 0.0
    %188 = vmatpush.msra.mxu0 0.0
    %189 = vmatpush.msra.mxu0 0.0
    %190 = vmatpush.msra.mxu0 0.0
    %191 = vmatpush.msra.mxu0 0.0
    %192 = vmatpush.msra.mxu0 0.0
    %193 = vmatpush.msra.mxu0 0.0
    %194 = vmatpush.msra.mxu0 0.0
    %195 = vmatpush.msra.mxu0 0.0
    %196 = vmatpush.msra.mxu0 0.0
    %197 = vmatpush.msra.mxu0 0.0
    %198 = vmatpush.msra.mxu0 %v82
    %199 = vmatpush.msra.mxu0 %v81
    %200 = vmatpush.msra.mxu0 %v80
    %201 = vmatpush.msra.mxu0 %v79
    %202 = vmatmul.f32.gmra.mxu0 %v184
    %v203 = vpop.f32.mrf.mxu0
    %v204 = vadd.f32 0.0, %v203
    %205 = vdwg.mxu0
    %v206 = vadd.f32 %v137, %v204
    %v207 = vtanh.pop %v206
    %v209 = vsel %vm157, %v207, 0
    %211 = vmatpush.msra.mxu0 0.0
    %212 = vmatpush.msra.mxu0 0.0
    %213 = vmatpush.msra.mxu0 0.0
    %214 = vmatpush.msra.mxu0 0.0
    %215 = vmatpush.msra.mxu0 0.0
    %216 = vmatpush.msra.mxu0 0.0
    %217 = vmatpush.msra.mxu0 0.0
    %218 = vmatpush.msra.mxu0 0.0
    %219 = vmatpush.msra.mxu0 0.0
    %220 = vmatpush.msra.mxu0 0.0
    %221 = vmatpush.msra.mxu0 0.0
    %222 = vmatpush.msra.mxu0 0.0
    %223 = vmatpush.msra.mxu0 %v82
    %224 = vmatpush.msra.mxu0 %v81
    %225 = vmatpush.msra.mxu0 %v80
    %226 = vmatpush.msra.mxu0 %v79
    %227 = vmatmul.f32.gmra.mxu0 %v209
    %v228 = vpop.f32.mrf.mxu0
    %v229 = vadd.f32 0.0, %v228
    %230 = vdwg.mxu0
    %v231 = vadd.f32 %v140, %v229
    %v232 = vtanh.pop %v231
    %v234 = vsel %vm157, %v232, 0
    %236 = vmatpush.msra.mxu0 0.0
    %237 = vmatpush.msra.mxu0 0.0
    %238 = vmatpush.msra.mxu0 0.0
    %239 = vmatpush.msra.mxu0 0.0
    %240 = vmatpush.msra.mxu0 0.0
    %241 = vmatpush.msra.mxu0 0.0
    %242 = vmatpush.msra.mxu0 0.0
    %243 = vmatpush.msra.mxu0 0.0
    %244 = vmatpush.msra.mxu0 0.0
    %245 = vmatpush.msra.mxu0 0.0
    %246 = vmatpush.msra.mxu0 0.0
    %247 = vmatpush.msra.mxu0 0.0
    %248 = vmatpush.msra.mxu0 %v82
    %249 = vmatpush.msra.mxu0 %v81
    %250 = vmatpush.msra.mxu0 %v80
    %251 = vmatpush.msra.mxu0 %v79
    %252 = vmatmul.f32.gmra.mxu0 %v234
    %v253 = vpop.f32.mrf.mxu0
    %v254 = vadd.f32 0.0, %v253
    %255 = vdwg.mxu0
    %v256 = vadd.f32 %v143, %v254
    %v257 = vtanh.pop %v256
    %v259 = vsel %vm157, %v257, 0
    %261 = vmatpush.msra.mxu0 0.0
    %262 = vmatpush.msra.mxu0 0.0
    %263 = vmatpush.msra.mxu0 0.0
    %264 = vmatpush.msra.mxu0 0.0
    %265 = vmatpush.msra.mxu0 0.0
    %266 = vmatpush.msra.mxu0 0.0
    %267 = vmatpush.msra.mxu0 0.0
    %268 = vmatpush.msra.mxu0 0.0
    %269 = vmatpush.msra.mxu0 0.0
    %270 = vmatpush.msra.mxu0 0.0
    %271 = vmatpush.msra.mxu0 0.0
    %272 = vmatpush.msra.mxu0 0.0
    %273 = vmatpush.msra.mxu0 %v82
    %274 = vmatpush.msra.mxu0 %v81
    %275 = vmatpush.msra.mxu0 %v80
    %276 = vmatpush.msra.mxu0 %v79
    %277 = vmatmul.f32.gmra.mxu0 %v259
    %v278 = vpop.f32.mrf.mxu0
    %v279 = vadd.f32 0.0, %v278
    %280 = vdwg.mxu0
    %v281 = vadd.f32 %v146, %v279
    %v282 = vtanh.pop %v281
    %v284 = vsel %vm157, %v282, 0
    %286 = vmatpush.msra.mxu0 0.0
    %287 = vmatpush.msra.mxu0 0.0
    %288 = vmatpush.msra.mxu0 0.0
    %289 = vmatpush.msra.mxu0 0.0
    %290 = vmatpush.msra.mxu0 0.0
    %291 = vmatpush.msra.mxu0 0.0
    %292 = vmatpush.msra.mxu0 0.0
    %293 = vmatpush.msra.mxu0 0.0
    %294 = vmatpush.msra.mxu0 0.0
    %295 = vmatpush.msra.mxu0 0.0
    %296 = vmatpush.msra.mxu0 0.0
    %297 = vmatpush.msra.mxu0 0.0
    %298 = vmatpush.msra.mxu0 %v82
    %299 = vmatpush.msra.mxu0 %v81
    %300 = vmatpush.msra.mxu0 %v80
    %301 = vmatpush.msra.mxu0 %v79
    %302 = vmatmul.f32.gmra.mxu0 %v284
    %v303 = vpop.f32.mrf.mxu0
    %v304 = vadd.f32 0.0, %v303
    %305 = vdwg.mxu0
    %v306 = vadd.f32 %v149, %v304
    %v307 = vtanh.pop %v306
    %v309 = vsel %vm157, %v307, 0
    %311 = vmatpush.msra.mxu0 0.0
    %312 = vmatpush.msra.mxu0 0.0
    %313 = vmatpush.msra.mxu0 0.0
    %314 = vmatpush.msra.mxu0 0.0
    %315 = vmatpush.msra.mxu0 0.0
    %316 = vmatpush.msra.mxu0 0.0
    %317 = vmatpush.msra.mxu0 0.0
    %318 = vmatpush.msra.mxu0 0.0
    %319 = vmatpush.msra.mxu0 0.0
    %320 = vmatpush.msra.mxu0 0.0
    %321 = vmatpush.msra.mxu0 0.0
    %322 = vmatpush.msra.mxu0 0.0
    %323 = vmatpush.msra.mxu0 %v82
    %324 = vmatpush.msra.mxu0 %v81
    %325 = vmatpush.msra.mxu0 %v80
    %326 = vmatpush.msra.mxu0 %v79
    %327 = vmatmul.f32.gmra.mxu0 %v309
    %v328 = vpop.f32.mrf.mxu0
    %v329 = vadd.f32 0.0, %v328
    %330 = vdwg.mxu0
    %v331 = vadd.f32 %v152, %v329
    %v332 = vtanh.pop %v331
    %v334 = vsel %vm157, %v332, 0
    %336 = vmatpush.msra.mxu0 0.0
    %337 = vmatpush.msra.mxu0 0.0
    %338 = vmatpush.msra.mxu0 0.0
    %339 = vmatpush.msra.mxu0 0.0
    %340 = vmatpush.msra.mxu0 0.0
    %341 = vmatpush.msra.mxu0 0.0
    %342 = vmatpush.msra.mxu0 0.0
    %343 = vmatpush.msra.mxu0 0.0
    %344 = vmatpush.msra.mxu0 0.0
    %345 = vmatpush.msra.mxu0 0.0
    %346 = vmatpush.msra.mxu0 0.0
    %347 = vmatpush.msra.mxu0 0.0
    %348 = vmatpush.msra.mxu0 %v82
    %349 = vmatpush.msra.mxu0 %v81
    %350 = vmatpush.msra.mxu0 %v80
    %351 = vmatpush.msra.mxu0 %v79
    %352 = vmatmul.f32.gmra.mxu0 %v334
    %v353 = vpop.f32.mrf.mxu0
    %v354 = vadd.f32 0.0, %v353
    %355 = vdwg.mxu0
    %v356 = vadd.f32 %v155, %v354
    %v357 = vtanh.pop %v356
    %v358 = vld [vmem:[%s4] sm:$0xff]
    %v359 = vld [vmem:[%s4 + $0x8] sm:$0xff]
    %v360 = vld [vmem:[%s4 + $0x10] sm:$0xff]
    %v361 = vld [vmem:[%s4 + $0x18] sm:$0xff]
    %v362 = vld [vmem:[%s5] sm:$0xff]
    %v363 = vld [vmem:[%s5 + $0x8] sm:$0xff]
    %v364 = vld [vmem:[%s5 + $0x10] sm:$0xff]
    %v365 = vld [vmem:[%s5 + $0x18] sm:$0xff]
    %v366 = vld [vmem:[%s6] sm:$0x1]
    %v368 = vperm.slane %v366, 0
    %v371 = vsel %vm157, %v357, 0
    %373 = vmatpush.msra.mxu0 0.0
    %374 = vmatpush.msra.mxu0 0.0
    %375 = vmatpush.msra.mxu0 0.0
    %376 = vmatpush.msra.mxu0 0.0
    %377 = vmatpush.msra.mxu0 0.0
    %378 = vmatpush.msra.mxu0 0.0
    %379 = vmatpush.msra.mxu0 0.0
    %380 = vmatpush.msra.mxu0 0.0
    %381 = vmatpush.msra.mxu0 0.0
    %382 = vmatpush.msra.mxu0 0.0
    %383 = vmatpush.msra.mxu0 0.0
    %384 = vmatpush.msra.mxu0 0.0
    %385 = vmatpush.msra.mxu0 %v361
    %386 = vmatpush.msra.mxu0 %v360
    %387 = vmatpush.msra.mxu0 %v359
    %388 = vmatpush.msra.mxu0 %v358
    %389 = vmatmul.f32.gmra.mxu0 %v184
    %v390 = vpop.f32.mrf.mxu0
    %v391 = vadd.f32 %v368, %v390
    %392 = vmatmul.f32.gmra.mxu0 %v209
    %v393 = vpop.f32.mrf.mxu0
    %v394 = vadd.f32 %v368, %v393
    %395 = vmatmul.f32.gmra.mxu0 %v234
    %v396 = vpop.f32.mrf.mxu0
    %v397 = vadd.f32 %v368, %v396
    %398 = vmatmul.f32.gmra.mxu0 %v259
    %v399 = vpop.f32.mrf.mxu0
    %v400 = vadd.f32 %v368, %v399
    %401 = vmatmul.f32.gmra.mxu0 %v284
    %v402 = vpop.f32.mrf.mxu0
    %v403 = vadd.f32 %v368, %v402
    %404 = vmatmul.f32.gmra.mxu0 %v309
    %v405 = vpop.f32.mrf.mxu0
    %v406 = vadd.f32 %v368, %v405
    %407 = vmatmul.f32.gmra.mxu0 %v334
    %v408 = vpop.f32.mrf.mxu0
    %v409 = vadd.f32 %v368, %v408
    %410 = vmatmul.f32.gmra.mxu0 %v371
    %v411 = vpop.f32.mrf.mxu0
    %v412 = vadd.f32 %v368, %v411
    %413 = vdwg.mxu0
    %414 = vmatpush.msra.mxu0 0.0
    %415 = vmatpush.msra.mxu0 0.0
    %416 = vmatpush.msra.mxu0 0.0
    %417 = vmatpush.msra.mxu0 0.0
    %418 = vmatpush.msra.mxu0 0.0
    %419 = vmatpush.msra.mxu0 0.0
    %420 = vmatpush.msra.mxu0 0.0
    %421 = vmatpush.msra.mxu0 0.0
    %422 = vmatpush.msra.mxu0 0.0
    %423 = vmatpush.msra.mxu0 0.0
    %424 = vmatpush.msra.mxu0 0.0
    %425 = vmatpush.msra.mxu0 0.0
    %426 = vmatpush.msra.mxu0 %v365
    %427 = vmatpush.msra.mxu0 %v364
    %428 = vmatpush.msra.mxu0 %v363
    %429 = vmatpush.msra.mxu0 %v362
    %430 = vmatmul.f32.gmra.mxu0 %v159
    %v431 = vpop.f32.mrf.mxu0
    %v432 = vadd.f32 0.0, %v431
    %433 = vdwg.mxu0
    %v434 = vadd.f32 %v391, %v432
    %v435 = vtanh.pop %v434
    %v437 = vsel %vm157, %v435, 0
    %439 = vmatpush.msra.mxu0 0.0
    %440 = vmatpush.msra.mxu0 0.0
    %441 = vmatpush.msra.mxu0 0.0
    %442 = vmatpush.msra.mxu0 0.0
    %443 = vmatpush.msra.mxu0 0.0
    %444 = vmatpush.msra.mxu0 0.0
    %445 = vmatpush.msra.mxu0 0.0
    %446 = vmatpush.msra.mxu0 0.0
    %447 = vmatpush.msra.mxu0 0.0
    %448 = vmatpush.msra.mxu0 0.0
    %449 = vmatpush.msra.mxu0 0.0
    %450 = vmatpush.msra.mxu0 0.0
    %451 = vmatpush.msra.mxu0 %v365
    %452 = vmatpush.msra.mxu0 %v364
    %453 = vmatpush.msra.mxu0 %v363
    %454 = vmatpush.msra.mxu0 %v362
    %455 = vmatmul.f32.gmra.mxu0 %v437
    %v456 = vpop.f32.mrf.mxu0
    %v457 = vadd.f32 0.0, %v456
    %458 = vdwg.mxu0
    %v459 = vadd.f32 %v394, %v457
    %v460 = vtanh.pop %v459
    %v462 = vsel %vm157, %v460, 0
    %464 = vmatpush.msra.mxu0 0.0
    %465 = vmatpush.msra.mxu0 0.0
    %466 = vmatpush.msra.mxu0 0.0
    %467 = vmatpush.msra.mxu0 0.0
    %468 = vmatpush.msra.mxu0 0.0
    %469 = vmatpush.msra.mxu0 0.0
    %470 = vmatpush.msra.mxu0 0.0
    %471 = vmatpush.msra.mxu0 0.0
    %472 = vmatpush.msra.mxu0 0.0
    %473 = vmatpush.msra.mxu0 0.0
    %474 = vmatpush.msra.mxu0 0.0
    %475 = vmatpush.msra.mxu0 0.0
    %476 = vmatpush.msra.mxu0 %v365
    %477 = vmatpush.msra.mxu0 %v364
    %478 = vmatpush.msra.mxu0 %v363
    %479 = vmatpush.msra.mxu0 %v362
    %480 = vmatmul.f32.gmra.mxu0 %v462
    %v481 = vpop.f32.mrf.mxu0
    %v482 = vadd.f32 0.0, %v481
    %483 = vdwg.mxu0
    %v484 = vadd.f32 %v397, %v482
    %v485 = vtanh.pop %v484
    %v487 = vsel %vm157, %v485, 0
    %489 = vmatpush.msra.mxu0 0.0
    %490 = vmatpush.msra.mxu0 0.0
    %491 = vmatpush.msra.mxu0 0.0
    %492 = vmatpush.msra.mxu0 0.0
    %493 = vmatpush.msra.mxu0 0.0
    %494 = vmatpush.msra.mxu0 0.0
    %495 = vmatpush.msra.mxu0 0.0
    %496 = vmatpush.msra.mxu0 0.0
    %497 = vmatpush.msra.mxu0 0.0
    %498 = vmatpush.msra.mxu0 0.0
    %499 = vmatpush.msra.mxu0 0.0
    %500 = vmatpush.msra.mxu0 0.0
    %501 = vmatpush.msra.mxu0 %v365
    %502 = vmatpush.msra.mxu0 %v364
    %503 = vmatpush.msra.mxu0 %v363
    %504 = vmatpush.msra.mxu0 %v362
    %505 = vmatmul.f32.gmra.mxu0 %v487
    %v506 = vpop.f32.mrf.mxu0
    %v507 = vadd.f32 0.0, %v506
    %508 = vdwg.mxu0
    %v509 = vadd.f32 %v400, %v507
    %v510 = vtanh.pop %v509
    %v512 = vsel %vm157, %v510, 0
    %514 = vmatpush.msra.mxu0 0.0
    %515 = vmatpush.msra.mxu0 0.0
    %516 = vmatpush.msra.mxu0 0.0
    %517 = vmatpush.msra.mxu0 0.0
    %518 = vmatpush.msra.mxu0 0.0
    %519 = vmatpush.msra.mxu0 0.0
    %520 = vmatpush.msra.mxu0 0.0
    %521 = vmatpush.msra.mxu0 0.0
    %522 = vmatpush.msra.mxu0 0.0
    %523 = vmatpush.msra.mxu0 0.0
    %524 = vmatpush.msra.mxu0 0.0
    %525 = vmatpush.msra.mxu0 0.0
    %526 = vmatpush.msra.mxu0 %v365
    %527 = vmatpush.msra.mxu0 %v364
    %528 = vmatpush.msra.mxu0 %v363
    %529 = vmatpush.msra.mxu0 %v362
    %530 = vmatmul.f32.gmra.mxu0 %v512
    %v531 = vpop.f32.mrf.mxu0
    %v532 = vadd.f32 0.0, %v531
    %533 = vdwg.mxu0
    %v534 = vadd.f32 %v403, %v532
    %v535 = vtanh.pop %v534
    %v537 = vsel %vm157, %v535, 0
    %539 = vmatpush.msra.mxu0 0.0
    %540 = vmatpush.msra.mxu0 0.0
    %541 = vmatpush.msra.mxu0 0.0
    %542 = vmatpush.msra.mxu0 0.0
    %543 = vmatpush.msra.mxu0 0.0
    %544 = vmatpush.msra.mxu0 0.0
    %545 = vmatpush.msra.mxu0 0.0
    %546 = vmatpush.msra.mxu0 0.0
    %547 = vmatpush.msra.mxu0 0.0
    %548 = vmatpush.msra.mxu0 0.0
    %549 = vmatpush.msra.mxu0 0.0
    %550 = vmatpush.msra.mxu0 0.0
    %551 = vmatpush.msra.mxu0 %v365
    %552 = vmatpush.msra.mxu0 %v364
    %553 = vmatpush.msra.mxu0 %v363
    %554 = vmatpush.msra.mxu0 %v362
    %555 = vmatmul.f32.gmra.mxu0 %v537
    %v556 = vpop.f32.mrf.mxu0
    %v557 = vadd.f32 0.0, %v556
    %558 = vdwg.mxu0
    %v559 = vadd.f32 %v406, %v557
    %v560 = vtanh.pop %v559
    %v562 = vsel %vm157, %v560, 0
    %564 = vmatpush.msra.mxu0 0.0
    %565 = vmatpush.msra.mxu0 0.0
    %566 = vmatpush.msra.mxu0 0.0
    %567 = vmatpush.msra.mxu0 0.0
    %568 = vmatpush.msra.mxu0 0.0
    %569 = vmatpush.msra.mxu0 0.0
    %570 = vmatpush.msra.mxu0 0.0
    %571 = vmatpush.msra.mxu0 0.0
    %572 = vmatpush.msra.mxu0 0.0
    %573 = vmatpush.msra.mxu0 0.0
    %574 = vmatpush.msra.mxu0 0.0
    %575 = vmatpush.msra.mxu0 0.0
    %576 = vmatpush.msra.mxu0 %v365
    %577 = vmatpush.msra.mxu0 %v364
    %578 = vmatpush.msra.mxu0 %v363
    %579 = vmatpush.msra.mxu0 %v362
    %580 = vmatmul.f32.gmra.mxu0 %v562
    %v581 = vpop.f32.mrf.mxu0
    %v582 = vadd.f32 0.0, %v581
    %583 = vdwg.mxu0
    %v584 = vadd.f32 %v409, %v582
    %v585 = vtanh.pop %v584
    %v587 = vsel %vm157, %v585, 0
    %589 = vmatpush.msra.mxu0 0.0
    %590 = vmatpush.msra.mxu0 0.0
    %591 = vmatpush.msra.mxu0 0.0
    %592 = vmatpush.msra.mxu0 0.0
    %593 = vmatpush.msra.mxu0 0.0
    %594 = vmatpush.msra.mxu0 0.0
    %595 = vmatpush.msra.mxu0 0.0
    %596 = vmatpush.msra.mxu0 0.0
    %597 = vmatpush.msra.mxu0 0.0
    %598 = vmatpush.msra.mxu0 0.0
    %599 = vmatpush.msra.mxu0 0.0
    %600 = vmatpush.msra.mxu0 0.0
    %601 = vmatpush.msra.mxu0 %v365
    %602 = vmatpush.msra.mxu0 %v364
    %603 = vmatpush.msra.mxu0 %v363
    %604 = vmatpush.msra.mxu0 %v362
    %605 = vmatmul.f32.gmra.mxu0 %v587
    %v606 = vpop.f32.mrf.mxu0
    %v607 = vadd.f32 0.0, %v606
    %608 = vdwg.mxu0
    %v609 = vadd.f32 %v412, %v607
    %v610 = vtanh.pop %v609
    %v611 = vrot.slane %v435, 2
    %612 = vrot.lane.b32.xlu0 %v611, 32
    %v613 = vpop.permute.xlu0 %612
    %v615 = vrot.slane %v435, 4
    %616 = vrot.lane.b32.xlu0 %v615, 64
    %v617 = vpop.permute.xlu0 %616
    %v619 = vrot.slane %v435, 6
    %620 = vrot.lane.b32.xlu0 %v619, 96
    %v621 = vpop.permute.xlu0 %620
    %v623 = vsel %vm157, %v435, %v613
    %vm624 = vcmask 523264
    %v625 = vsel %vm624, %v623, %v617
    %vm626 = vcmask 785408
    %v627 = vsel %vm626, %v625, %v621
    %v628 = vrot.slane %v460, 2
    %629 = vrot.lane.b32.xlu0 %v628, 32
    %v630 = vpop.permute.xlu0 %629
    %v632 = vrot.slane %v460, 4
    %633 = vrot.lane.b32.xlu0 %v632, 64
    %v634 = vpop.permute.xlu0 %633
    %v636 = vrot.slane %v460, 6
    %637 = vrot.lane.b32.xlu0 %v636, 96
    %v638 = vpop.permute.xlu0 %637
    %v640 = vsel %vm157, %v460, %v630
    %v641 = vsel %vm624, %v640, %v634
    %v642 = vsel %vm626, %v641, %v638
    %v643 = vrot.slane %v485, 2
    %644 = vrot.lane.b32.xlu0 %v643, 32
    %v645 = vpop.permute.xlu0 %644
    %v647 = vrot.slane %v485, 4
    %648 = vrot.lane.b32.xlu0 %v647, 64
    %v649 = vpop.permute.xlu0 %648
    %v651 = vrot.slane %v485, 6
    %652 = vrot.lane.b32.xlu0 %v651, 96
    %v653 = vpop.permute.xlu0 %652
    %v655 = vsel %vm157, %v485, %v645
    %v656 = vsel %vm624, %v655, %v649
    %v657 = vsel %vm626, %v656, %v653
    %v658 = vrot.slane %v510, 2
    %659 = vrot.lane.b32.xlu0 %v658, 32
    %v660 = vpop.permute.xlu0 %659
    %v662 = vrot.slane %v510, 4
    %663 = vrot.lane.b32.xlu0 %v662, 64
    %v664 = vpop.permute.xlu0 %663
    %v666 = vrot.slane %v510, 6
    %667 = vrot.lane.b32.xlu0 %v666, 96
    %v668 = vpop.permute.xlu0 %667
    %v670 = vsel %vm157, %v510, %v660
    %v671 = vsel %vm624, %v670, %v664
    %v672 = vsel %vm626, %v671, %v668
    %v673 = vrot.slane %v535, 2
    %674 = vrot.lane.b32.xlu0 %v673, 32
    %v675 = vpop.permute.xlu0 %674
    %v677 = vrot.slane %v535, 4
    %678 = vrot.lane.b32.xlu0 %v677, 64
    %v679 = vpop.permute.xlu0 %678
    %v681 = vrot.slane %v535, 6
    %682 = vrot.lane.b32.xlu0 %v681, 96
    %v683 = vpop.permute.xlu0 %682
    %v685 = vsel %vm157, %v535, %v675
    %v686 = vsel %vm624, %v685, %v679
    %v687 = vsel %vm626, %v686, %v683
    %v688 = vrot.slane %v560, 2
    %689 = vrot.lane.b32.xlu0 %v688, 32
    %v690 = vpop.permute.xlu0 %689
    %v692 = vrot.slane %v560, 4
    %693 = vrot.lane.b32.xlu0 %v692, 64
    %v694 = vpop.permute.xlu0 %693
    %v696 = vrot.slane %v560, 6
    %697 = vrot.lane.b32.xlu0 %v696, 96
    %v698 = vpop.permute.xlu0 %697
    %v700 = vsel %vm157, %v560, %v690
    %v701 = vsel %vm624, %v700, %v694
    %v702 = vsel %vm626, %v701, %v698
    %v703 = vrot.slane %v585, 2
    %704 = vrot.lane.b32.xlu0 %v703, 32
    %v705 = vpop.permute.xlu0 %704
    %v707 = vrot.slane %v585, 4
    %708 = vrot.lane.b32.xlu0 %v707, 64
    %v709 = vpop.permute.xlu0 %708
    %v711 = vrot.slane %v585, 6
    %712 = vrot.lane.b32.xlu0 %v711, 96
    %v713 = vpop.permute.xlu0 %712
    %v715 = vsel %vm157, %v585, %v705
    %v716 = vsel %vm624, %v715, %v709
    %v717 = vsel %vm626, %v716, %v713
    %v719 = vrot.slane %v610, 2
    %720 = vrot.lane.b32.xlu0 %v719, 32
    %v721 = vpop.permute.xlu0 %720
    %v723 = vrot.slane %v610, 4
    %724 = vrot.lane.b32.xlu0 %v723, 64
    %v725 = vpop.permute.xlu0 %724
    %v727 = vrot.slane %v610, 6
    %728 = vrot.lane.b32.xlu0 %v727, 96
    %v729 = vpop.permute.xlu0 %728
    %v731 = vsel %vm157, %v610, %v721
    %v732 = vsel %vm624, %v731, %v725
    %v733 = vsel %vm626, %v732, %v729
    %v735 = vrot.slane %v642, 6
    %v738 = vrot.slane %v657, 4
    %v741 = vrot.slane %v672, 2
    %v744 = vrot.slane %v702, 6
    %v747 = vrot.slane %v717, 4
    %v750 = vrot.slane %v733, 2
    %vm752 = vcmask 1041408
    %v753 = vsel %vm752, %v627, %v735
    %vm754 = vcmask 1043456
    %v755 = vsel %vm754, %v753, %v738
    %vm756 = vcmask 1045504
    %v757 = vsel %vm756, %v755, %v741
    %v758 = vsel %vm752, %v687, %v744
    %v759 = vsel %vm754, %v758, %v747
    %v760 = vsel %vm756, %v759, %v750
    %v761 = vld [vmem:[#allocation2] sm:$0xff]
    %v762 = vld [vmem:[#allocation2 + $0x8] sm:$0xff]
    %v763 = vld [vmem:[#allocation2 + $0x10] sm:$0xff]
    %v764 = vld [vmem:[#allocation2 + $0x18] sm:$0xff]
    %v765 = vld [vmem:[#allocation2 + $0x20] sm:$0xff]
    %v766 = vld [vmem:[#allocation2 + $0x28] sm:$0xff]
    %v767 = vld [vmem:[#allocation2 + $0x30] sm:$0xff]
    %v768 = vld [vmem:[#allocation2 + $0x38] sm:$0xff]
    %v769 = vld [vmem:[#allocation2 + $0x40] sm:$0xff]
    %v770 = vld [vmem:[#allocation2 + $0x48] sm:$0xff]
    %v771 = vld [vmem:[#allocation2 + $0x50] sm:$0xff]
    %v772 = vld [vmem:[#allocation2 + $0x58] sm:$0xff]
    %v773 = vld [vmem:[#allocation2 + $0x60] sm:$0xff]
    %v774 = vld [vmem:[#allocation2 + $0x68] sm:$0xff]
    %v775 = vld [vmem:[#allocation2 + $0x70] sm:$0xff]
    %v776 = vld [vmem:[#allocation2 + $0x78] sm:$0xff]
    %v777 = vld [vmem:[#allocation2 + $0x80] sm:$0xff]
    %v778 = vld [vmem:[#allocation2 + $0x88] sm:$0xff]
    %v779 = vld [vmem:[#allocation2 + $0x90] sm:$0xff]
    %v780 = vld [vmem:[#allocation2 + $0x98] sm:$0xff]
    %v781 = vld [vmem:[#allocation2 + $0xa0] sm:$0xff]
    %v782 = vld [vmem:[#allocation2 + $0xa8] sm:$0xff]
    %v783 = vld [vmem:[#allocation2 + $0xb0] sm:$0xff]
    %v784 = vld [vmem:[#allocation2 + $0xb8] sm:$0xff]
    %v785 = vld [vmem:[#allocation2 + $0xc0] sm:$0xff]
    %v786 = vld [vmem:[#allocation2 + $0xc8] sm:$0xff]
    %v787 = vld [vmem:[#allocation2 + $0xd0] sm:$0xff]
    %v788 = vld [vmem:[#allocation2 + $0xd8] sm:$0xff]
    %v789 = vld [vmem:[#allocation2 + $0xe0] sm:$0xff]
    %v790 = vld [vmem:[#allocation2 + $0xe8] sm:$0xff]
    %v791 = vld [vmem:[#allocation2 + $0xf0] sm:$0xff]
    %v792 = vld [vmem:[#allocation2 + $0xf8] sm:$0xff]
    %v793 = vld [vmem:[%s8] sm:$0x3]
    %v795 = vperm.slane %v793, 0
    %v796 = vperm.slane %v793, 1
    %799 = vmatpush.msra.mxu0 %v791
    %800 = vmatpush.msra.mxu0 %v789
    %801 = vmatpush.msra.mxu0 %v787
    %802 = vmatpush.msra.mxu0 %v785
    %803 = vmatpush.msra.mxu0 %v783
    %804 = vmatpush.msra.mxu0 %v781
    %805 = vmatpush.msra.mxu0 %v779
    %806 = vmatpush.msra.mxu0 %v777
    %807 = vmatpush.msra.mxu0 %v775
    %808 = vmatpush.msra.mxu0 %v773
    %809 = vmatpush.msra.mxu0 %v771
    %810 = vmatpush.msra.mxu0 %v769
    %811 = vmatpush.msra.mxu0 %v767
    %812 = vmatpush.msra.mxu0 %v765
    %813 = vmatpush.msra.mxu0 %v763
    %814 = vmatpush.msra.mxu0 %v761
    %815 = vmatmul.f32.gmra.mxu0 %v757
    %v816 = vpop.f32.mrf.mxu0
    %v817 = vadd.f32 %v795, %v816
    %818 = vmatmul.f32.gmra.mxu0 %v760
    %v819 = vpop.f32.mrf.mxu0
    %v820 = vadd.f32 %v795, %v819
    %821 = vdwg.mxu0
    %822 = vmatpush.msra.mxu0 %v792
    %823 = vmatpush.msra.mxu0 %v790
    %824 = vmatpush.msra.mxu0 %v788
    %825 = vmatpush.msra.mxu0 %v786
    %826 = vmatpush.msra.mxu0 %v784
    %827 = vmatpush.msra.mxu0 %v782
    %828 = vmatpush.msra.mxu0 %v780
    %829 = vmatpush.msra.mxu0 %v778
    %830 = vmatpush.msra.mxu0 %v776
    %831 = vmatpush.msra.mxu0 %v774
    %832 = vmatpush.msra.mxu0 %v772
    %833 = vmatpush.msra.mxu0 %v770
    %834 = vmatpush.msra.mxu0 %v768
    %835 = vmatpush.msra.mxu0 %v766
    %836 = vmatpush.msra.mxu0 %v764
    %837 = vmatpush.msra.mxu0 %v762
    %838 = vmatmul.f32.gmra.mxu0 %v757
    %v839 = vpop.f32.mrf.mxu0
    %v840 = vadd.f32 %v796, %v839
    %841 = vmatmul.f32.gmra.mxu0 %v760
    %v842 = vpop.f32.mrf.mxu0
    %v843 = vadd.f32 %v796, %v842
    %844 = vdwg.mxu0
    %v845 = vmax.f32 %v817, 0.0
    %v846 = vmax.f32 %v840, 0.0
    %v847 = vmax.f32 %v820, 0.0
    %v848 = vmax.f32 %v843, 0.0
    %v849 = vld [vmem:[#allocation4] sm:$0xff]
    %v850 = vld [vmem:[#allocation4 + $0x8] sm:$0xff]
    %v851 = vld [vmem:[#allocation4 + $0x10] sm:$0xff]
    %v852 = vld [vmem:[#allocation4 + $0x18] sm:$0xff]
    %v853 = vld [vmem:[#allocation4 + $0x20] sm:$0xff]
    %v854 = vld [vmem:[#allocation4 + $0x28] sm:$0xff]
    %v855 = vld [vmem:[#allocation4 + $0x30] sm:$0xff]
    %v856 = vld [vmem:[#allocation4 + $0x38] sm:$0xff]
    %v857 = vld [vmem:[#allocation4 + $0x40] sm:$0xff]
    %v858 = vld [vmem:[#allocation4 + $0x48] sm:$0xff]
    %v859 = vld [vmem:[#allocation4 + $0x50] sm:$0xff]
    %v860 = vld [vmem:[#allocation4 + $0x58] sm:$0xff]
    %v861 = vld [vmem:[#allocation4 + $0x60] sm:$0xff]
    %v862 = vld [vmem:[#allocation4 + $0x68] sm:$0xff]
    %v863 = vld [vmem:[#allocation4 + $0x70] sm:$0xff]
    %v864 = vld [vmem:[#allocation4 + $0x78] sm:$0xff]
    %v865 = vld [vmem:[#allocation4 + $0x80] sm:$0xff]
    %v866 = vld [vmem:[#allocation4 + $0x88] sm:$0xff]
    %v867 = vld [vmem:[#allocation4 + $0x90] sm:$0xff]
    %v868 = vld [vmem:[#allocation4 + $0x98] sm:$0xff]
    %v869 = vld [vmem:[#allocation4 + $0xa0] sm:$0xff]
    %v870 = vld [vmem:[#allocation4 + $0xa8] sm:$0xff]
    %v871 = vld [vmem:[#allocation4 + $0xb0] sm:$0xff]
    %v872 = vld [vmem:[#allocation4 + $0xb8] sm:$0xff]
    %v873 = vld [vmem:[#allocation4 + $0xc0] sm:$0xff]
    %v874 = vld [vmem:[#allocation4 + $0xc8] sm:$0xff]
    %v875 = vld [vmem:[#allocation4 + $0xd0] sm:$0xff]
    %v876 = vld [vmem:[#allocation4 + $0xd8] sm:$0xff]
    %v877 = vld [vmem:[#allocation4 + $0xe0] sm:$0xff]
    %v878 = vld [vmem:[#allocation4 + $0xe8] sm:$0xff]
    %v879 = vld [vmem:[#allocation4 + $0xf0] sm:$0xff]
    %v880 = vld [vmem:[#allocation4 + $0xf8] sm:$0xff]
    %v881 = vld [vmem:[%s10] sm:$0x1]
    %v883 = vperm.slane %v881, 0
    %885 = vmatpush.msra.mxu0 %v864
    %886 = vmatpush.msra.mxu0 %v863
    %887 = vmatpush.msra.mxu0 %v862
    %888 = vmatpush.msra.mxu0 %v861
    %889 = vmatpush.msra.mxu0 %v860
    %890 = vmatpush.msra.mxu0 %v859
    %891 = vmatpush.msra.mxu0 %v858
    %892 = vmatpush.msra.mxu0 %v857
    %893 = vmatpush.msra.mxu0 %v856
    %894 = vmatpush.msra.mxu0 %v855
    %895 = vmatpush.msra.mxu0 %v854
    %896 = vmatpush.msra.mxu0 %v853
    %897 = vmatpush.msra.mxu0 %v852
    %898 = vmatpush.msra.mxu0 %v851
    %899 = vmatpush.msra.mxu0 %v850
    %900 = vmatpush.msra.mxu0 %v849
    %901 = vmatmul.f32.gmra.mxu0 %v845
    %v902 = vpop.f32.mrf.mxu0
    %v903 = vadd.f32 %v883, %v902
    %904 = vmatmul.f32.gmra.mxu0 %v847
    %v905 = vpop.f32.mrf.mxu0
    %v906 = vadd.f32 %v883, %v905
    %907 = vdwg.mxu0
    %908 = vmatpush.msra.mxu0 %v880
    %909 = vmatpush.msra.mxu0 %v879
    %910 = vmatpush.msra.mxu0 %v878
    %911 = vmatpush.msra.mxu0 %v877
    %912 = vmatpush.msra.mxu0 %v876
    %913 = vmatpush.msra.mxu0 %v875
    %914 = vmatpush.msra.mxu0 %v874
    %915 = vmatpush.msra.mxu0 %v873
    %916 = vmatpush.msra.mxu0 %v872
    %917 = vmatpush.msra.mxu0 %v871
    %918 = vmatpush.msra.mxu0 %v870
    %919 = vmatpush.msra.mxu0 %v869
    %920 = vmatpush.msra.mxu0 %v868
    %921 = vmatpush.msra.mxu0 %v867
    %922 = vmatpush.msra.mxu0 %v866
    %923 = vmatpush.msra.mxu0 %v865
    %924 = vmatmul.f32.gmra.mxu0 %v846
    %v925 = vpop.f32.mrf.mxu0
    %v926 = vadd.f32 %v903, %v925
    %927 = vmatmul.f32.gmra.mxu0 %v848
    %v928 = vpop.f32.mrf.mxu0
    %v929 = vadd.f32 %v906, %v928
    %930 = vdwg.mxu0
    %931 = vst [vmem:[%s11] sm:$0xff] %v926
    %932 = vst [vmem:[%s11 + $0x8] sm:$0xff] %v929
    // Predicated region
    $region54: #{_lambda_.1} parent=1 // pred_check
      _
    $region55: #{_lambda_.1} parent=1 // pred_check_branch
      %934 = sbr.rel (0) target = $region57
    $region56: #{_lambda_.1} parent=1 // pred_region
      _
    $region57: #{_lambda_.1} parent=1 // pred_fallthru
      _
    // Predicated region
    $region58: #{_lambda_.1} parent=1 // pred_check
      _
    $region59: #{_lambda_.1} parent=1 // pred_check_branch
      %936 = sbr.rel (0) target = $region61
    $region60: #{_lambda_.1} parent=1 // pred_region
      _
    $region61: #{_lambda_.1} parent=1 // pred_fallthru
      _
    %937 = vsyncpa [#allocation3], 1
    %938 = vsyncpa [#allocation5], 1

</llo_original>
